<compile_context>
chip_gen: v7x
topology: tpu7x:2x2x1
jax: 0.10.0
libtpu: 0.0.40
codegen_flags: <defaults>
</compile_context>

<pallas_src>
import functools

import jax
import jax.numpy as jnp
from jax.experimental import pallas as pl
from jax.experimental.pallas import tpu as pltpu

N_JOINTS = 16                    # config.n_joints (deterministic synthetic choice)
LANE = 128
SUBLANE = 8
TARGET_TILE_BYTES = 2 << 20      # ~2 MiB of native-dtype HBM data per input tile
MAX_ROW_TILE = 8192
NUM_SPLITS = 2                   # leading 'parallel' axis -> both TCs on v7x
SMALL_INPUT_BYTES = 64 << 10     # below this, fused XLA reduction beats kernel launch


def _cdiv(a, b):
    return (a + b - 1) // b


def _round_up(a, b):
    return _cdiv(a, b) * b


def _mse_partial_kernel(x_ref, y_ref, out_ref, acc_ref, *, n_valid_rows):
    """Accumulate per-(sublane, lane) partial sums of (x - y)^2 for one split.

    Grid = (split i : 'parallel', block-within-split k : 'arbitrary').
    acc_ref is an (8, 128) f32 VMEM accumulator carried across k.
    """
    i = pl.program_id(0)
    k = pl.program_id(1)
    nk = pl.num_programs(1)
    row_tile = x_ref.shape[0]

    @pl.when(k == 0)
    def _init():
        acc_ref[...] = jnp.zeros_like(acc_ref)

    # Inputs stream in their native dtype; upcast in-register.
    d = x_ref[...].astype(jnp.float32) - y_ref[...].astype(jnp.float32)

    # Logical (unclamped) first row of this block. Blocks fully inside the real
    # array take the unmasked fast path; only the tail block of a split
    # (partial edge block, or clamped redundant re-read block) pays the mask.
    row0 = (i * nk + k) * row_tile
    is_clean = row0 + row_tile <= n_valid_rows

    @pl.when(is_clean)
    def _steady():
        sq = d * d
        # Leading-dim-only reshape is tile-aligned; sum over axis 0 is pure
        # vreg-wise VPU adds into the (8, 128) accumulator (no XLU).
        acc_ref[...] += jnp.sum(
            sq.reshape(row_tile // SUBLANE, SUBLANE, LANE), axis=0)

    @pl.when(jnp.logical_not(is_clean))
    def _tail():
        # IMPORTANT: mask BEFORE squaring/accumulating. Rows beyond the real
        # array may hold garbage (possibly NaN/Inf) from the partial block,
        # and clamped redundant blocks re-read already-counted data; row0 is
        # derived from the logical, unclamped block index so those rows all
        # fail the mask and contribute exactly 0.
        row_ids = row0 + jax.lax.broadcasted_iota(jnp.int32, d.shape, 0)
        dm = jnp.where(row_ids < n_valid_rows, d, 0.0)
        sq = dm * dm
        acc_ref[...] += jnp.sum(
            sq.reshape(row_tile // SUBLANE, SUBLANE, LANE), axis=0)

    @pl.when(k == nk - 1)
    def _finalize():
        # Store the raw (8, 128) partial-sum slab; the final tiny reduction
        # over num_splits * 1024 floats happens in the wrapper.
        out_ref[...] = acc_ref[...]


def deeppose_loss(out, target):
    """MSE loss (reduction='mean'), matching DeepposeLose.forward."""
    assert out.shape == target.shape, (out.shape, target.shape)
    n = out.size
    nbytes = n * out.dtype.itemsize

    x = out.reshape(-1)
    y = target.reshape(-1)

    # Small-input fast path: typical Deeppose batches are microscopic and the
    # fixed pallas_call launch / pipeline-prime cost dwarfs a fused reduction.
    if nbytes < SMALL_INPUT_BYTES:
        d = x.astype(jnp.float32) - y.astype(jnp.float32)
        return jnp.sum(d * d) / jnp.float32(n)

    # Lane-dense (rows, 128) view of the flattened data (free reshape when the
    # element count is a multiple of 128, which is the common case). Any
    # <128-element remainder is reduced with plain jnp and added back.
    n_main = (n // LANE) * LANE
    tail_sum = jnp.float32(0.0)
    if n_main < n:
        xt = x[n_main:].astype(jnp.float32)
        yt = y[n_main:].astype(jnp.float32)
        tail_sum = jnp.sum((xt - yt) ** 2)
        x = x[:n_main]
        y = y[:n_main]
    x2 = x.reshape(-1, LANE)
    y2 = y.reshape(-1, LANE)
    n_rows = x2.shape[0]

    # Dtype-aware block sizing: ~TARGET_TILE_BYTES of native-dtype data per
    # input tile, rows a multiple of 8, never (much) larger than the array.
    # VMEM budget: 2 inputs x 2 pipeline buffers x 2 MiB = 8 MiB (+4 KiB acc),
    # inside even v5e's 16 MiB default scoped limit.
    bytes_per_row = LANE * x2.dtype.itemsize
    row_tile = TARGET_TILE_BYTES // bytes_per_row
    row_tile = min(row_tile, MAX_ROW_TILE, _round_up(n_rows, SUBLANE))
    row_tile = max(SUBLANE, (row_tile // SUBLANE) * SUBLANE)

    total_blocks = _cdiv(n_rows, row_tile)
    num_splits = NUM_SPLITS if total_blocks >= NUM_SPLITS else 1
    bps = _cdiv(total_blocks, num_splits)        # blocks per split

    def in_map(i, k):
        # Clamp: a split's redundant trailing iterations re-read the last valid
        # block; the in-kernel row mask zeroes their contribution.
        return (jnp.minimum(i * bps + k, total_blocks - 1), 0)

    kernel = functools.partial(_mse_partial_kernel, n_valid_rows=n_rows)

    partial_slabs = pl.pallas_call(
        kernel,
        out_shape=jax.ShapeDtypeStruct((num_splits * SUBLANE, LANE), jnp.float32),
        grid_spec=pltpu.PrefetchScalarGridSpec(
            num_scalar_prefetch=0,
            grid=(num_splits, bps),
            in_specs=[
                pl.BlockSpec((row_tile, LANE), in_map),
                pl.BlockSpec((row_tile, LANE), in_map),
            ],
            out_specs=pl.BlockSpec((SUBLANE, LANE), lambda i, k: (i, 0)),
            scratch_shapes=[pltpu.VMEM((SUBLANE, LANE), jnp.float32)],
        ),
        compiler_params=pltpu.CompilerParams(
            dimension_semantics=("parallel", "arbitrary"),
        ),
    )(x2, y2)

    total = jnp.sum(partial_slabs) + tail_sum
    return total / jnp.float32(n)


if __name__ == "__main__":
    key = jax.random.PRNGKey(0)

    def ref_loss(o, t):
        o32 = o.reshape(-1, N_JOINTS, 2).astype(jnp.float32)
        t32 = t.reshape(-1, N_JOINTS, 2).astype(jnp.float32)
        return jnp.mean((o32 - t32) ** 2)

    cases = [
        (2, jnp.float32),        # tiny -> jnp fast path
        (64, jnp.bfloat16),      # small bf16 -> fast path
        (1024, jnp.float32),     # kernel path: single block, single split
        (16400, jnp.float32),    # kernel path: 2-way split, partial tail block
        (16401, jnp.float32),    # element count not a multiple of 128 (jnp tail)
        (40000, jnp.bfloat16),   # bf16 streaming, dtype-aware 8192-row tiles
    ]
    for batch, dtype in cases:
        k1, k2 = jax.random.split(jax.random.fold_in(key, batch))
        o = jax.random.normal(k1, (batch, N_JOINTS * 2), dtype=jnp.float32).astype(dtype)
        t = jax.random.normal(k2, (batch, N_JOINTS * 2), dtype=jnp.float32).astype(dtype)

        loss = jax.block_until_ready(deeppose_loss(o, t))
        ref = ref_loss(o, t)
        assert jnp.allclose(loss, ref, rtol=1e-4, atol=1e-6), (batch, str(dtype), loss, ref)

    print("KERNEL_OK")
</pallas_src>

<mosaic_0001>
module attributes {stable_mosaic.version = 11 : i64} {
  func.func @_mse_partial_kernel(%arg0: i32, %arg1: i32, %arg2: memref<256x128xf32, #tpu.memory_space<vmem>>, %arg3: memref<256x128xf32, #tpu.memory_space<vmem>>, %arg4: memref<8x128xf32, #tpu.memory_space<vmem>>, %arg5: memref<8x128xf32, #tpu.memory_space<vmem>>) attributes {dimension_semantics = [#tpu.dimension_semantics<parallel>, #tpu.dimension_semantics<arbitrary>], iteration_bounds = array<i64: 1, 1>, scalar_prefetch = 0 : i64, scratch_operands = 1 : i64, tpu.core_type = #tpu.core_type<tc>, window_params = [{transform_indices = @transform_0, window_bounds = array<i64: 256, 128>}, {transform_indices = @transform_1, window_bounds = array<i64: 256, 128>}, {transform_indices = @transform_2, window_bounds = array<i64: 8, 128>}]} {
    %c0_i32 = arith.constant 0 : i32
    %0 = arith.cmpi eq, %arg1, %c0_i32 : i32
    %1 = arith.extui %0 : i1 to i32
    %c0_i32_0 = arith.constant 0 : i32
    %2 = arith.cmpi ne, %1, %c0_i32_0 : i32
    scf.if %2 {
      %cst = arith.constant 0.000000e+00 : f32
      %19 = vector.broadcast %cst : f32 to vector<8x128xf32>
      %c0_10 = arith.constant 0 : index
      %c0_11 = arith.constant 0 : index
      %20 = vector.load %arg5[%c0_10, %c0_11] : memref<8x128xf32, #tpu.memory_space<vmem>>, vector<8x128xf32>
      tpu.vector_store %arg5[%c0_10, %c0_11], %19 {strides = array<i32>} : memref<8x128xf32, #tpu.memory_space<vmem>>, vector<8x128xf32>,
    } else {
    }
    %c0 = arith.constant 0 : index
    %c0_1 = arith.constant 0 : index
    %3 = vector.load %arg2[%c0, %c0_1] : memref<256x128xf32, #tpu.memory_space<vmem>>, vector<256x128xf32>
    %c0_2 = arith.constant 0 : index
    %c0_3 = arith.constant 0 : index
    %4 = vector.load %arg3[%c0_2, %c0_3] : memref<256x128xf32, #tpu.memory_space<vmem>>, vector<256x128xf32>
    %5 = arith.subf %3, %4 : vector<256x128xf32>
    %c1_i32 = arith.constant 1 : i32
    %6 = arith.muli %arg0, %c1_i32 : i32
    %7 = arith.addi %6, %arg1 : i32
    %c256_i32 = arith.constant 256 : i32
    %8 = arith.muli %7, %c256_i32 : i32
    %c256_i32_4 = arith.constant 256 : i32
    %9 = arith.addi %8, %c256_i32_4 : i32
    %c256_i32_5 = arith.constant 256 : i32
    %10 = arith.cmpi sle, %9, %c256_i32_5 : i32
    %11 = arith.extui %10 : i1 to i32
    %c0_i32_6 = arith.constant 0 : i32
    %12 = arith.cmpi ne, %11, %c0_i32_6 : i32
    scf.if %12 {
      %19 = arith.mulf %5, %5 : vector<256x128xf32>
      %c0_10 = arith.constant 0 : index
      %c0_11 = arith.constant 0 : index
      %20 = vector.load %arg5[%c0_10, %c0_11] : memref<8x128xf32, #tpu.memory_space<vmem>>, vector<8x128xf32>
      %21 = vector.shape_cast %19 : vector<256x128xf32> to vector<32x8x128xf32>
      %cst = arith.constant dense<0.000000e+00> : vector<8x128xf32>
      %22 = vector.multi_reduction <add>, %21, %cst [0] : vector<32x8x128xf32> to vector<8x128xf32>
      %23 = arith.addf %20, %22 : vector<8x128xf32>
      %c0_12 = arith.constant 0 : index
      %c0_13 = arith.constant 0 : index
      %24 = vector.load %arg5[%c0_12, %c0_13] : memref<8x128xf32, #tpu.memory_space<vmem>>, vector<8x128xf32>
      tpu.vector_store %arg5[%c0_12, %c0_13], %23 {strides = array<i32>} : memref<8x128xf32, #tpu.memory_space<vmem>>, vector<8x128xf32>,
    } else {
    }
    %true = arith.constant true
    %13 = arith.xori %10, %true : i1
    %14 = arith.extui %13 : i1 to i32
    %c0_i32_7 = arith.constant 0 : i32
    %15 = arith.cmpi ne, %14, %c0_i32_7 : i32
    scf.if %15 {
      %19 = tpu.iota {dimensions = array<i32: 0>} : vector<256x128xi32>
      %20 = vector.broadcast %8 : i32 to vector<256x128xi32>
      %21 = arith.addi %20, %19 : vector<256x128xi32>
      %c256_i32_10 = arith.constant 256 : i32
      %22 = vector.broadcast %c256_i32_10 : i32 to vector<256x128xi32>
      %23 = arith.cmpi slt, %21, %22 : vector<256x128xi32>
      %cst = arith.constant 0.000000e+00 : f32
      %24 = vector.broadcast %cst : f32 to vector<256x128xf32>
      %25 = arith.select %23, %5, %24 : vector<256x128xi1>, vector<256x128xf32>
      %26 = arith.mulf %25, %25 : vector<256x128xf32>
      %c0_11 = arith.constant 0 : index
      %c0_12 = arith.constant 0 : index
      %27 = vector.load %arg5[%c0_11, %c0_12] : memref<8x128xf32, #tpu.memory_space<vmem>>, vector<8x128xf32>
      %28 = vector.shape_cast %26 : vector<256x128xf32> to vector<32x8x128xf32>
      %cst_13 = arith.constant dense<0.000000e+00> : vector<8x128xf32>
      %29 = vector.multi_reduction <add>, %28, %cst_13 [0] : vector<32x8x128xf32> to vector<8x128xf32>
      %30 = arith.addf %27, %29 : vector<8x128xf32>
      %c0_14 = arith.constant 0 : index
      %c0_15 = arith.constant 0 : index
      %31 = vector.load %arg5[%c0_14, %c0_15] : memref<8x128xf32, #tpu.memory_space<vmem>>, vector<8x128xf32>
      tpu.vector_store %arg5[%c0_14, %c0_15], %30 {strides = array<i32>} : memref<8x128xf32, #tpu.memory_space<vmem>>, vector<8x128xf32>,
    } else {
    }
    %c0_i32_8 = arith.constant 0 : i32
    %16 = arith.cmpi eq, %arg1, %c0_i32_8 : i32
    %17 = arith.extui %16 : i1 to i32
    %c0_i32_9 = arith.constant 0 : i32
    %18 = arith.cmpi ne, %17, %c0_i32_9 : i32
    scf.if %18 {
      %c0_10 = arith.constant 0 : index
      %c0_11 = arith.constant 0 : index
      %19 = vector.load %arg5[%c0_10, %c0_11] : memref<8x128xf32, #tpu.memory_space<vmem>>, vector<8x128xf32>
      %c0_12 = arith.constant 0 : index
      %c0_13 = arith.constant 0 : index
      %20 = vector.load %arg4[%c0_12, %c0_13] : memref<8x128xf32, #tpu.memory_space<vmem>>, vector<8x128xf32>
      tpu.vector_store %arg4[%c0_12, %c0_13], %19 {strides = array<i32>} : memref<8x128xf32, #tpu.memory_space<vmem>>, vector<8x128xf32>,
    } else {
    }
    return
  }
  func.func @transform_0(%arg0: i32, %arg1: i32) -> (i32, i32) {
    %c1_i32 = arith.constant 1 : i32
    %0 = arith.muli %arg0, %c1_i32 : i32
    %1 = arith.addi %0, %arg1 : i32
    %c0_i32 = arith.constant 0 : i32
    %2 = arith.minsi %1, %c0_i32 : i32
    %c0_i32_0 = arith.constant 0 : i32
    %c0_i32_1 = arith.constant 0 : i32
    return %2, %c0_i32_0 : i32, i32
  }
  func.func @transform_1(%arg0: i32, %arg1: i32) -> (i32, i32) {
    %c1_i32 = arith.constant 1 : i32
    %0 = arith.muli %arg0, %c1_i32 : i32
    %1 = arith.addi %0, %arg1 : i32
    %c0_i32 = arith.constant 0 : i32
    %2 = arith.minsi %1, %c0_i32 : i32
    %c0_i32_0 = arith.constant 0 : i32
    %c0_i32_1 = arith.constant 0 : i32
    return %2, %c0_i32_0 : i32, i32
  }
  func.func @transform_2(%arg0: i32, %arg1: i32) -> (i32, i32) {
    %c0_i32 = arith.constant 0 : i32
    %c0_i32_0 = arith.constant 0 : i32
    return %arg0, %c0_i32 : i32, i32
  }
}

</mosaic_0001>

<llo_original>
// kernel: tpu_custom_call.1
$region0: #{tpu_custom_call.1}
  #allocation0 [shape = 'u32[]', space=smem, size = 0x4, offset = 0x4, fixed_abs, tag = 'smem constant byte address 0x4 - core index']
  #allocation1 [shape = 'u32[144,128]{1,0:T(1,128)}', space=vmem, size = 0x12000, scoped, tag = 'internal scratch']
  #allocation2 [shape = 'f32[8,128]{1,0:T(8,128)}', space=vmem, size = 0x1000, scoped, tag = 'scratch operand']
  %s0 = inlined_call_operand.hbm [shape: f32[256,128], index: 0, kind: input, shape index: {}]
  %s1 = inlined_call_operand.hbm [shape: f32[256,128], index: 1, kind: input, shape index: {}]
  %s2 = inlined_call_operand.hbm [shape: f32[8,128], index: 2, kind: output, shape index: {}]
  %s3 = sld [smem:[#allocation0]]
  $region42: #{tpu_custom_call.1} parent=0
    _
  %s5 = ssub.s32 1, %s3
  %s6 = scalar_select 0, %s5, %s3
  $region1: #{tpu_custom_call.1} parent=0
    #allocation3 [shape = 'u8[131072]{0}', space=vmem, size = 0x20000, scoped, tag = 'input window, operand 0, single buffered']
    #allocation4 [shape = 's32[1]{0}', space=sflag, size = 0x4, scoped, tag = 'scoped memory for tpu_custom_call.1']
    #allocation5 [shape = 's32[1]{0}', space=sflag, size = 0x4, scoped, tag = 'scoped memory for tpu_custom_call.1']
    #allocation6 [shape = 'u8[131072]{0}', space=vmem, size = 0x20000, scoped, tag = 'input window, operand 1, single buffered']
    #allocation7 [shape = 's32[1]{0}', space=sflag, size = 0x4, scoped, tag = 'scoped memory for tpu_custom_call.1']
    #allocation8 [shape = 'u8[4096]{0}', space=vmem, size = 0x1000, scoped, tag = 'output window, operand 0, single buffered']
    %7 = vsyncpa [#allocation4], 0
    %8 = vsyncpa [#allocation7], 0
    %9 = vsyncpa [#allocation5], 0
    // Predicated region
    $region2: #{tpu_custom_call.1} parent=1 // pred_check
      _
    $region3: #{tpu_custom_call.1} parent=1 // pred_check_branch
      %11 = sbr.rel (0) target = $region5
    $region4: #{tpu_custom_call.1} parent=1 // pred_region
      %s12 = sadd.s32 0, 0
      %p13 = scmp.lt.s32.totalorder %s12, 0
      %s14 = scalar_select %p13, %s12, 0
      %s15 = smul.u32 32, %s14
      %s17 = ssub.s32 4096, 4096
      %18 = vsyncadd [#allocation4], %s17
      %s19 = smul.addr %s15, 128
      %s20 = scalar_lea.hbm %s0, %s19
      %s21 = sshll.u32 [#allocation3], 4
      %s22 = int_to_ptr.vmem [resolvable:$true] %s21
      %27 = dma.hbm_to_vmem [thread:$0]  %s20, 4096, %s22, [#allocation4], 128, 128, 8
    $region5: #{tpu_custom_call.1} parent=1 // pred_fallthru
      _
    // Predicated region
    $region6: #{tpu_custom_call.1} parent=1 // pred_check
      _
    $region7: #{tpu_custom_call.1} parent=1 // pred_check_branch
      %29 = sbr.rel (0) target = $region9
    $region8: #{tpu_custom_call.1} parent=1 // pred_region
      %s30 = sadd.s32 0, 0
      %p31 = scmp.lt.s32.totalorder %s30, 0
      %s32 = scalar_select %p31, %s30, 0
      %s33 = smul.u32 32, %s32
      %s35 = ssub.s32 4096, 4096
      %36 = vsyncadd [#allocation7], %s35
      %s37 = smul.addr %s33, 128
      %s38 = scalar_lea.hbm %s1, %s37
      %s39 = sshll.u32 [#allocation6], 4
      %s40 = int_to_ptr.vmem [resolvable:$true] %s39
      %45 = dma.hbm_to_vmem [thread:$0]  %s38, 4096, %s40, [#allocation7], 128, 128, 8
    $region9: #{tpu_custom_call.1} parent=1 // pred_fallthru
      _
    // Predicated region
    $region10: #{tpu_custom_call.1} parent=1 // pred_check
      _
    $region11: #{tpu_custom_call.1} parent=1 // pred_check_branch
      %47 = sbr.rel (0) target = $region13
    $region12: #{tpu_custom_call.1} parent=1 // pred_region
      %48 = dma.done [#allocation4], 4096
    $region13: #{tpu_custom_call.1} parent=1 // pred_fallthru
      _
    // Predicated region
    $region14: #{tpu_custom_call.1} parent=1 // pred_check
      _
    $region15: #{tpu_custom_call.1} parent=1 // pred_check_branch
      %50 = sbr.rel (0) target = $region17
    $region16: #{tpu_custom_call.1} parent=1 // pred_region
      %51 = dma.done [#allocation7], 4096
    $region17: #{tpu_custom_call.1} parent=1 // pred_fallthru
      _
    %s52 = sadd.s32 0, 0
    %p53 = scmp.lt.s32.totalorder %s52, 0
    %s54 = scalar_select %p53, %s52, 0
    %s55 = smul.u32 32, %s54
    %s56 = sadd.s32 0, 0
    %p57 = scmp.lt.s32.totalorder %s56, 0
    %s58 = scalar_select %p57, %s56, 0
    %s59 = smul.u32 32, %s58
    %p60 = scmp.eq.s32.totalorder 0, 0
    // Predicated region
    $region18: #{tpu_custom_call.1} parent=1 // pred_check
      %p61 = pneg %p60
    $region19: #{tpu_custom_call.1} parent=1 // pred_check_branch
      %63 = sbr.rel (%p61) target = $region21
    $region20: #{tpu_custom_call.1} parent=1 // pred_region
      %64 = vst [vmem:[#allocation2] sm:$0xff] 0.0
    $region21: #{tpu_custom_call.1} parent=1 // pred_fallthru
      _
    %v65 = vld [vmem:[#allocation3] sm:$0xff]
    %v66 = vld [vmem:[#allocation3 + $0x8] sm:$0xff]
    %v67 = vld [vmem:[#allocation3 + $0x10] sm:$0xff]
    %v68 = vld [vmem:[#allocation3 + $0x18] sm:$0xff]
    %v69 = vld [vmem:[#allocation3 + $0x20] sm:$0xff]
    %v70 = vld [vmem:[#allocation3 + $0x28] sm:$0xff]
    %v71 = vld [vmem:[#allocation3 + $0x30] sm:$0xff]
    %v72 = vld [vmem:[#allocation3 + $0x38] sm:$0xff]
    %v73 = vld [vmem:[#allocation3 + $0x40] sm:$0xff]
    %v74 = vld [vmem:[#allocation3 + $0x48] sm:$0xff]
    %v75 = vld [vmem:[#allocation3 + $0x50] sm:$0xff]
    %v76 = vld [vmem:[#allocation3 + $0x58] sm:$0xff]
    %v77 = vld [vmem:[#allocation3 + $0x60] sm:$0xff]
    %v78 = vld [vmem:[#allocation3 + $0x68] sm:$0xff]
    %v79 = vld [vmem:[#allocation3 + $0x70] sm:$0xff]
    %v80 = vld [vmem:[#allocation3 + $0x78] sm:$0xff]
    %v81 = vld [vmem:[#allocation3 + $0x80] sm:$0xff]
    %v82 = vld [vmem:[#allocation3 + $0x88] sm:$0xff]
    %v83 = vld [vmem:[#allocation3 + $0x90] sm:$0xff]
    %v84 = vld [vmem:[#allocation3 + $0x98] sm:$0xff]
    %v85 = vld [vmem:[#allocation3 + $0xa0] sm:$0xff]
    %v86 = vld [vmem:[#allocation3 + $0xa8] sm:$0xff]
    %v87 = vld [vmem:[#allocation3 + $0xb0] sm:$0xff]
    %v88 = vld [vmem:[#allocation3 + $0xb8] sm:$0xff]
    %v89 = vld [vmem:[#allocation3 + $0xc0] sm:$0xff]
    %v90 = vld [vmem:[#allocation3 + $0xc8] sm:$0xff]
    %v91 = vld [vmem:[#allocation3 + $0xd0] sm:$0xff]
    %v92 = vld [vmem:[#allocation3 + $0xd8] sm:$0xff]
    %v93 = vld [vmem:[#allocation3 + $0xe0] sm:$0xff]
    %v94 = vld [vmem:[#allocation3 + $0xe8] sm:$0xff]
    %v95 = vld [vmem:[#allocation3 + $0xf0] sm:$0xff]
    %v96 = vld [vmem:[#allocation3 + $0xf8] sm:$0xff]
    %v97 = vld [vmem:[#allocation6] sm:$0xff]
    %v98 = vld [vmem:[#allocation6 + $0x8] sm:$0xff]
    %v99 = vld [vmem:[#allocation6 + $0x10] sm:$0xff]
    %v100 = vld [vmem:[#allocation6 + $0x18] sm:$0xff]
    %v101 = vld [vmem:[#allocation6 + $0x20] sm:$0xff]
    %v102 = vld [vmem:[#allocation6 + $0x28] sm:$0xff]
    %v103 = vld [vmem:[#allocation6 + $0x30] sm:$0xff]
    %v104 = vld [vmem:[#allocation6 + $0x38] sm:$0xff]
    %v105 = vld [vmem:[#allocation6 + $0x40] sm:$0xff]
    %v106 = vld [vmem:[#allocation6 + $0x48] sm:$0xff]
    %v107 = vld [vmem:[#allocation6 + $0x50] sm:$0xff]
    %v108 = vld [vmem:[#allocation6 + $0x58] sm:$0xff]
    %v109 = vld [vmem:[#allocation6 + $0x60] sm:$0xff]
    %v110 = vld [vmem:[#allocation6 + $0x68] sm:$0xff]
    %v111 = vld [vmem:[#allocation6 + $0x70] sm:$0xff]
    %v112 = vld [vmem:[#allocation6 + $0x78] sm:$0xff]
    %v113 = vld [vmem:[#allocation6 + $0x80] sm:$0xff]
    %v114 = vld [vmem:[#allocation6 + $0x88] sm:$0xff]
    %v115 = vld [vmem:[#allocation6 + $0x90] sm:$0xff]
    %v116 = vld [vmem:[#allocation6 + $0x98] sm:$0xff]
    %v117 = vld [vmem:[#allocation6 + $0xa0] sm:$0xff]
    %v118 = vld [vmem:[#allocation6 + $0xa8] sm:$0xff]
    %v119 = vld [vmem:[#allocation6 + $0xb0] sm:$0xff]
    %v120 = vld [vmem:[#allocation6 + $0xb8] sm:$0xff]
    %v121 = vld [vmem:[#allocation6 + $0xc0] sm:$0xff]
    %v122 = vld [vmem:[#allocation6 + $0xc8] sm:$0xff]
    %v123 = vld [vmem:[#allocation6 + $0xd0] sm:$0xff]
    %v124 = vld [vmem:[#allocation6 + $0xd8] sm:$0xff]
    %v125 = vld [vmem:[#allocation6 + $0xe0] sm:$0xff]
    %v126 = vld [vmem:[#allocation6 + $0xe8] sm:$0xff]
    %v127 = vld [vmem:[#allocation6 + $0xf0] sm:$0xff]
    %v128 = vld [vmem:[#allocation6 + $0xf8] sm:$0xff]
    %v129 = vsub.f32 %v65, %v97
    %v130 = vsub.f32 %v66, %v98
    %v131 = vsub.f32 %v67, %v99
    %v132 = vsub.f32 %v68, %v100
    %v133 = vsub.f32 %v69, %v101
    %v134 = vsub.f32 %v70, %v102
    %v135 = vsub.f32 %v71, %v103
    %v136 = vsub.f32 %v72, %v104
    %v137 = vsub.f32 %v73, %v105
    %v138 = vsub.f32 %v74, %v106
    %v139 = vsub.f32 %v75, %v107
    %v140 = vsub.f32 %v76, %v108
    %v141 = vsub.f32 %v77, %v109
    %v142 = vsub.f32 %v78, %v110
    %v143 = vsub.f32 %v79, %v111
    %v144 = vsub.f32 %v80, %v112
    %v145 = vsub.f32 %v81, %v113
    %v146 = vsub.f32 %v82, %v114
    %v147 = vsub.f32 %v83, %v115
    %v148 = vsub.f32 %v84, %v116
    %v149 = vsub.f32 %v85, %v117
    %v150 = vsub.f32 %v86, %v118
    %v151 = vsub.f32 %v87, %v119
    %v152 = vsub.f32 %v88, %v120
    %v153 = vsub.f32 %v89, %v121
    %v154 = vsub.f32 %v90, %v122
    %v155 = vsub.f32 %v91, %v123
    %v156 = vsub.f32 %v92, %v124
    %v157 = vsub.f32 %v93, %v125
    %v158 = vsub.f32 %v94, %v126
    %v159 = vsub.f32 %v95, %v127
    %v160 = vsub.f32 %v96, %v128
    %s161 = sadd.s32 0, 0
    %s162 = smul.u32 %s161, 256
    %s163 = sadd.s32 %s162, 256
    %p164 = scmp.le.s32.totalorder %s163, 256
    // Predicated region
    $region22: #{tpu_custom_call.1} parent=1 // pred_check
      %p165 = pneg %p164
    $region23: #{tpu_custom_call.1} parent=1 // pred_check_branch
      %167 = sbr.rel (%p165) target = $region25
    $region24: #{tpu_custom_call.1} parent=1 // pred_region
      %v168 = vmul.f32 %v129, %v129
      %v169 = vmul.f32 %v130, %v130
      %v170 = vmul.f32 %v131, %v131
      %v171 = vmul.f32 %v132, %v132
      %v172 = vmul.f32 %v133, %v133
      %v173 = vmul.f32 %v134, %v134
      %v174 = vmul.f32 %v135, %v135
      %v175 = vmul.f32 %v136, %v136
      %v176 = vmul.f32 %v137, %v137
      %v177 = vmul.f32 %v138, %v138
      %v178 = vmul.f32 %v139, %v139
      %v179 = vmul.f32 %v140, %v140
      %v180 = vmul.f32 %v141, %v141
      %v181 = vmul.f32 %v142, %v142
      %v182 = vmul.f32 %v143, %v143
      %v183 = vmul.f32 %v144, %v144
      %v184 = vmul.f32 %v145, %v145
      %v185 = vmul.f32 %v146, %v146
      %v186 = vmul.f32 %v147, %v147
      %v187 = vmul.f32 %v148, %v148
      %v188 = vmul.f32 %v149, %v149
      %v189 = vmul.f32 %v150, %v150
      %v190 = vmul.f32 %v151, %v151
      %v191 = vmul.f32 %v152, %v152
      %v192 = vmul.f32 %v153, %v153
      %v193 = vmul.f32 %v154, %v154
      %v194 = vmul.f32 %v155, %v155
      %v195 = vmul.f32 %v156, %v156
      %v196 = vmul.f32 %v157, %v157
      %v197 = vmul.f32 %v158, %v158
      %v198 = vmul.f32 %v159, %v159
      %v199 = vmul.f32 %v160, %v160
      %v200 = vld [vmem:[#allocation2] sm:$0xff]
      %v201 = vadd.f32 %v168, %v169
      %v202 = vadd.f32 %v201, %v170
      %v203 = vadd.f32 %v202, %v171
      %v204 = vadd.f32 %v203, %v172
      %v205 = vadd.f32 %v204, %v173
      %v206 = vadd.f32 %v205, %v174
      %v207 = vadd.f32 %v206, %v175
      %v208 = vadd.f32 %v207, %v176
      %v209 = vadd.f32 %v208, %v177
      %v210 = vadd.f32 %v209, %v178
      %v211 = vadd.f32 %v210, %v179
      %v212 = vadd.f32 %v211, %v180
      %v213 = vadd.f32 %v212, %v181
      %v214 = vadd.f32 %v213, %v182
      %v215 = vadd.f32 %v214, %v183
      %v216 = vadd.f32 %v215, %v184
      %v217 = vadd.f32 %v216, %v185
      %v218 = vadd.f32 %v217, %v186
      %v219 = vadd.f32 %v218, %v187
      %v220 = vadd.f32 %v219, %v188
      %v221 = vadd.f32 %v220, %v189
      %v222 = vadd.f32 %v221, %v190
      %v223 = vadd.f32 %v222, %v191
      %v224 = vadd.f32 %v223, %v192
      %v225 = vadd.f32 %v224, %v193
      %v226 = vadd.f32 %v225, %v194
      %v227 = vadd.f32 %v226, %v195
      %v228 = vadd.f32 %v227, %v196
      %v229 = vadd.f32 %v228, %v197
      %v230 = vadd.f32 %v229, %v198
      %v231 = vadd.f32 %v230, %v199
      %v232 = vadd.f32 %v200, %v231
      %233 = vst [vmem:[#allocation2] sm:$0xff] %v232
    $region25: #{tpu_custom_call.1} parent=1 // pred_fallthru
      _
    %p234 = scmp.gt.s32.totalorder %s163, 256
    // Predicated region
    $region26: #{tpu_custom_call.1} parent=1 // pred_check
      %p235 = pneg %p234
    $region27: #{tpu_custom_call.1} parent=1 // pred_check_branch
      %237 = sbr.rel (%p235) target = $region29
    $region28: #{tpu_custom_call.1} parent=1 // pred_region
      %v238 = vlaneseq
      %v239 = vshrl.u32 %v238, 7
      %v240 = vadd.s32 %v239, 8
      %v241 = vadd.s32 %v239, 16
      %v242 = vadd.s32 %v239, 24
      %v243 = vadd.s32 %v239, 32
      %v244 = vadd.s32 %v239, 40
      %v245 = vadd.s32 %v239, 48
      %v246 = vadd.s32 %v239, 56
      %v247 = vadd.s32 %v239, 64
      %v248 = vadd.s32 %v239, 72
      %v249 = vadd.s32 %v239, 80
      %v250 = vadd.s32 %v239, 88
      %v251 = vadd.s32 %v239, 96
      %v252 = vadd.s32 %v239, 104
      %v253 = vadd.s32 %v239, 112
      %v254 = vadd.s32 %v239, 120
      %v255 = vadd.s32 %v239, 128
      %v256 = vadd.s32 %v239, 136
      %v257 = vadd.s32 %v239, 144
      %v258 = vadd.s32 %v239, 152
      %v259 = vadd.s32 %v239, 160
      %v260 = vadd.s32 %v239, 168
      %v261 = vadd.s32 %v239, 176
      %v262 = vadd.s32 %v239, 184
      %v263 = vadd.s32 %v239, 192
      %v264 = vadd.s32 %v239, 200
      %v265 = vadd.s32 %v239, 208
      %v266 = vadd.s32 %v239, 216
      %v267 = vadd.s32 %v239, 224
      %v268 = vadd.s32 %v239, 232
      %v269 = vadd.s32 %v239, 240
      %v270 = vadd.s32 %v239, 248
      %v271 = vstv %s162
      %v272 = vadd.s32 %v271, %v239
      %v273 = vadd.s32 %v271, %v240
      %v274 = vadd.s32 %v271, %v241
      %v275 = vadd.s32 %v271, %v242
      %v276 = vadd.s32 %v271, %v243
      %v277 = vadd.s32 %v271, %v244
      %v278 = vadd.s32 %v271, %v245
      %v279 = vadd.s32 %v271, %v246
      %v280 = vadd.s32 %v271, %v247
      %v281 = vadd.s32 %v271, %v248
      %v282 = vadd.s32 %v271, %v249
      %v283 = vadd.s32 %v271, %v250
      %v284 = vadd.s32 %v271, %v251
      %v285 = vadd.s32 %v271, %v252
      %v286 = vadd.s32 %v271, %v253
      %v287 = vadd.s32 %v271, %v254
      %v288 = vadd.s32 %v271, %v255
      %v289 = vadd.s32 %v271, %v256
      %v290 = vadd.s32 %v271, %v257
      %v291 = vadd.s32 %v271, %v258
      %v292 = vadd.s32 %v271, %v259
      %v293 = vadd.s32 %v271, %v260
      %v294 = vadd.s32 %v271, %v261
      %v295 = vadd.s32 %v271, %v262
      %v296 = vadd.s32 %v271, %v263
      %v297 = vadd.s32 %v271, %v264
      %v298 = vadd.s32 %v271, %v265
      %v299 = vadd.s32 %v271, %v266
      %v300 = vadd.s32 %v271, %v267
      %v301 = vadd.s32 %v271, %v268
      %v302 = vadd.s32 %v271, %v269
      %v303 = vadd.s32 %v271, %v270
      %vm304 = vcmp.lt.s32.totalorder %v272, 256
      %vm305 = vcmp.lt.s32.totalorder %v273, 256
      %vm306 = vcmp.lt.s32.totalorder %v274, 256
      %vm307 = vcmp.lt.s32.totalorder %v275, 256
      %vm308 = vcmp.lt.s32.totalorder %v276, 256
      %vm309 = vcmp.lt.s32.totalorder %v277, 256
      %vm310 = vcmp.lt.s32.totalorder %v278, 256
      %vm311 = vcmp.lt.s32.totalorder %v279, 256
      %vm312 = vcmp.lt.s32.totalorder %v280, 256
      %vm313 = vcmp.lt.s32.totalorder %v281, 256
      %vm314 = vcmp.lt.s32.totalorder %v282, 256
      %vm315 = vcmp.lt.s32.totalorder %v283, 256
      %vm316 = vcmp.lt.s32.totalorder %v284, 256
      %vm317 = vcmp.lt.s32.totalorder %v285, 256
      %vm318 = vcmp.lt.s32.totalorder %v286, 256
      %vm319 = vcmp.lt.s32.totalorder %v287, 256
      %vm320 = vcmp.lt.s32.totalorder %v288, 256
      %vm321 = vcmp.lt.s32.totalorder %v289, 256
      %vm322 = vcmp.lt.s32.totalorder %v290, 256
      %vm323 = vcmp.lt.s32.totalorder %v291, 256
      %vm324 = vcmp.lt.s32.totalorder %v292, 256
      %vm325 = vcmp.lt.s32.totalorder %v293, 256
      %vm326 = vcmp.lt.s32.totalorder %v294, 256
      %vm327 = vcmp.lt.s32.totalorder %v295, 256
      %vm328 = vcmp.lt.s32.totalorder %v296, 256
      %vm329 = vcmp.lt.s32.totalorder %v297, 256
      %vm330 = vcmp.lt.s32.totalorder %v298, 256
      %vm331 = vcmp.lt.s32.totalorder %v299, 256
      %vm332 = vcmp.lt.s32.totalorder %v300, 256
      %vm333 = vcmp.lt.s32.totalorder %v301, 256
      %vm334 = vcmp.lt.s32.totalorder %v302, 256
      %vm335 = vcmp.lt.s32.totalorder %v303, 256
      %v336 = vsel %vm304, %v129, 0.0
      %v337 = vsel %vm305, %v130, 0.0
      %v338 = vsel %vm306, %v131, 0.0
      %v339 = vsel %vm307, %v132, 0.0
      %v340 = vsel %vm308, %v133, 0.0
      %v341 = vsel %vm309, %v134, 0.0
      %v342 = vsel %vm310, %v135, 0.0
      %v343 = vsel %vm311, %v136, 0.0
      %v344 = vsel %vm312, %v137, 0.0
      %v345 = vsel %vm313, %v138, 0.0
      %v346 = vsel %vm314, %v139, 0.0
      %v347 = vsel %vm315, %v140, 0.0
      %v348 = vsel %vm316, %v141, 0.0
      %v349 = vsel %vm317, %v142, 0.0
      %v350 = vsel %vm318, %v143, 0.0
      %v351 = vsel %vm319, %v144, 0.0
      %v352 = vsel %vm320, %v145, 0.0
      %v353 = vsel %vm321, %v146, 0.0
      %v354 = vsel %vm322, %v147, 0.0
      %v355 = vsel %vm323, %v148, 0.0
      %v356 = vsel %vm324, %v149, 0.0
      %v357 = vsel %vm325, %v150, 0.0
      %v358 = vsel %vm326, %v151, 0.0
      %v359 = vsel %vm327, %v152, 0.0
      %v360 = vsel %vm328, %v153, 0.0
      %v361 = vsel %vm329, %v154, 0.0
      %v362 = vsel %vm330, %v155, 0.0
      %v363 = vsel %vm331, %v156, 0.0
      %v364 = vsel %vm332, %v157, 0.0
      %v365 = vsel %vm333, %v158, 0.0
      %v366 = vsel %vm334, %v159, 0.0
      %v367 = vsel %vm335, %v160, 0.0
      %v368 = vmul.f32 %v336, %v336
      %v369 = vmul.f32 %v337, %v337
      %v370 = vmul.f32 %v338, %v338
      %v371 = vmul.f32 %v339, %v339
      %v372 = vmul.f32 %v340, %v340
      %v373 = vmul.f32 %v341, %v341
      %v374 = vmul.f32 %v342, %v342
      %v375 = vmul.f32 %v343, %v343
      %v376 = vmul.f32 %v344, %v344
      %v377 = vmul.f32 %v345, %v345
      %v378 = vmul.f32 %v346, %v346
      %v379 = vmul.f32 %v347, %v347
      %v380 = vmul.f32 %v348, %v348
      %v381 = vmul.f32 %v349, %v349
      %v382 = vmul.f32 %v350, %v350
      %v383 = vmul.f32 %v351, %v351
      %v384 = vmul.f32 %v352, %v352
      %v385 = vmul.f32 %v353, %v353
      %v386 = vmul.f32 %v354, %v354
      %v387 = vmul.f32 %v355, %v355
      %v388 = vmul.f32 %v356, %v356
      %v389 = vmul.f32 %v357, %v357
      %v390 = vmul.f32 %v358, %v358
      %v391 = vmul.f32 %v359, %v359
      %v392 = vmul.f32 %v360, %v360
      %v393 = vmul.f32 %v361, %v361
      %v394 = vmul.f32 %v362, %v362
      %v395 = vmul.f32 %v363, %v363
      %v396 = vmul.f32 %v364, %v364
      %v397 = vmul.f32 %v365, %v365
      %v398 = vmul.f32 %v366, %v366
      %v399 = vmul.f32 %v367, %v367
      %v400 = vld [vmem:[#allocation2] sm:$0xff]
      %v401 = vadd.f32 %v368, %v369
      %v402 = vadd.f32 %v401, %v370
      %v403 = vadd.f32 %v402, %v371
      %v404 = vadd.f32 %v403, %v372
      %v405 = vadd.f32 %v404, %v373
      %v406 = vadd.f32 %v405, %v374
      %v407 = vadd.f32 %v406, %v375
      %v408 = vadd.f32 %v407, %v376
      %v409 = vadd.f32 %v408, %v377
      %v410 = vadd.f32 %v409, %v378
      %v411 = vadd.f32 %v410, %v379
      %v412 = vadd.f32 %v411, %v380
      %v413 = vadd.f32 %v412, %v381
      %v414 = vadd.f32 %v413, %v382
      %v415 = vadd.f32 %v414, %v383
      %v416 = vadd.f32 %v415, %v384
      %v417 = vadd.f32 %v416, %v385
      %v418 = vadd.f32 %v417, %v386
      %v419 = vadd.f32 %v418, %v387
      %v420 = vadd.f32 %v419, %v388
      %v421 = vadd.f32 %v420, %v389
      %v422 = vadd.f32 %v421, %v390
      %v423 = vadd.f32 %v422, %v391
      %v424 = vadd.f32 %v423, %v392
      %v425 = vadd.f32 %v424, %v393
      %v426 = vadd.f32 %v425, %v394
      %v427 = vadd.f32 %v426, %v395
      %v428 = vadd.f32 %v427, %v396
      %v429 = vadd.f32 %v428, %v397
      %v430 = vadd.f32 %v429, %v398
      %v431 = vadd.f32 %v430, %v399
      %v432 = vadd.f32 %v400, %v431
      %433 = vst [vmem:[#allocation2] sm:$0xff] %v432
    $region29: #{tpu_custom_call.1} parent=1 // pred_fallthru
      _
    // Predicated region
    $region30: #{tpu_custom_call.1} parent=1 // pred_check
      %p434 = pneg %p60
    $region31: #{tpu_custom_call.1} parent=1 // pred_check_branch
      %436 = sbr.rel (%p434) target = $region33
    $region32: #{tpu_custom_call.1} parent=1 // pred_region
      %v437 = vld [vmem:[#allocation2] sm:$0xff]
      %438 = vst [vmem:[#allocation8] sm:$0xff] %v437
    $region33: #{tpu_custom_call.1} parent=1 // pred_fallthru
      _
    // Predicated region
    $region34: #{tpu_custom_call.1} parent=1 // pred_check
      _
    $region35: #{tpu_custom_call.1} parent=1 // pred_check_branch
      %440 = sbr.rel (0) target = $region37
    $region36: #{tpu_custom_call.1} parent=1 // pred_region
      %s442 = ssub.s32 128, 128
      %443 = vsyncadd [#allocation5], %s442
      %s445 = sshll.u32 [#allocation8], 4
      %s446 = int_to_ptr.vmem [resolvable:$true] %s445
      %448 = dma.vmem_to_hbm [thread:$0]  %s446, 128, %s2, [#allocation5]
    $region37: #{tpu_custom_call.1} parent=1 // pred_fallthru
      _
    // Predicated region
    $region38: #{tpu_custom_call.1} parent=1 // pred_check
      _
    $region39: #{tpu_custom_call.1} parent=1 // pred_check_branch
      %450 = sbr.rel (0) target = $region41
    $region40: #{tpu_custom_call.1} parent=1 // pred_region
      %451 = dma.done [#allocation5], 128
    $region41: #{tpu_custom_call.1} parent=1 // pred_fallthru
      _
    %452 = vsyncpa [#allocation4], 1
    %453 = vsyncpa [#allocation7], 1
    %454 = vsyncpa [#allocation5], 1

</llo_original>
